<compile_context>
chip_gen: v7x
topology: tpu7x:2x2x1
jax: 0.10.0
libtpu: 0.0.40
codegen_flags: <defaults>
</compile_context>

<pallas_src>
import jax
import jax.numpy as jnp
from jax.experimental import pallas as pl
from jax.experimental.pallas import tpu as pltpu

LEAKY_SLOPE = 0.01  # PyTorch nn.LeakyReLU default


def _leaky_relu(x):
    # For 0 < slope < 1, max(x, slope*x) == leaky_relu(x); 2 VALU ops.
    return jnp.maximum(x, LEAKY_SLOPE * x)


def _round_up(x, m):
    return ((x + m - 1) // m) * m


def _edge_mlp_kernel(e_ref, hs_ref, hd_ref,
                     w1_ref, b1_ref, w2_ref, b2_ref, w3_ref, b3_ref, o_ref):
    # Layer 1: fuse the concat in VMEM and run a single K=in_dim matmul
    # (instead of three partial dots + two f32 adds).
    x = jnp.concatenate([e_ref[...], hs_ref[...], hd_ref[...]], axis=-1)
    h = jnp.dot(x, w1_ref[...], preferred_element_type=jnp.float32) + b1_ref[...]
    h = _leaky_relu(h)
    # Layers 2 & 3: bf16 MXU inputs, f32 accumulation, f32 bias add.
    h = jnp.dot(h.astype(w2_ref.dtype), w2_ref[...],
                preferred_element_type=jnp.float32) + b2_ref[...]
    h = _leaky_relu(h)
    h = jnp.dot(h.astype(w3_ref.dtype), w3_ref[...],
                preferred_element_type=jnp.float32) + b3_ref[...]
    h = _leaky_relu(h)
    o_ref[...] = h.astype(o_ref.dtype)


def _block_diag(w, pack):
    """(k, n) -> (pack*k, pack*n) block-diagonal [[w,0,..],[0,w,..],...]."""
    if pack == 1:
        return w
    k, n = w.shape
    out = jnp.zeros((pack * k, pack * n), w.dtype)
    for p in range(pack):
        out = out.at[p * k:(p + 1) * k, p * n:(p + 1) * n].set(w)
    return out


def edge_mlp_pallas(edge_feat, src_h, dst_h, params, *, tile_e=8192,
                    compute_dtype=jnp.bfloat16, out_dtype=jnp.float32):
    """edge_feat: [E, e_dim], src_h/dst_h: [E, h_dim]. Returns [E, out_dim]."""
    (w1, b1), (w2, b2), (w3, b3) = params
    E, e_dim = edge_feat.shape
    h_dim = src_h.shape[1]
    in_dim = e_dim + 2 * h_dim
    hid1 = w1.shape[1]
    hid2 = w2.shape[1]
    out_dim = w3.shape[1]
    assert w1.shape[0] == in_dim, "W1 rows must equal e_dim + 2*h_dim"
    assert w2.shape[0] == hid1 and w3.shape[0] == hid2

    if E == 0:
        return jnp.zeros((0, out_dim), out_dtype)

    # ---- lane-dense packing factor -------------------------------------
    # Fold `pack` consecutive edges into one row so that the output block is
    # >= 128 lanes wide (unmasked stores, dense DMAs).  Free in HBM (row-major
    # reshape); weights become block-diagonal, so the math is unchanged.
    pack = 1
    if out_dim < 128 and 128 % out_dim == 0:
        pack = min(128 // out_dim, 4)
    while pack > 1 and E % pack != 0:
        pack //= 2
    E_p = E // pack

    # ---- tile size (in packed rows) -------------------------------------
    # As big as VMEM comfortably allows, but clamped so the grid has >= ~4
    # steps (two v7x TensorCores x double buffering); multiples of 128 rows
    # keep bf16 sublane packing happy.
    tep = min(max(tile_e // pack, 128),
              _round_up(pl.cdiv(E_p, 4), 128),
              _round_up(E_p, 8))
    tep = max(tep, 8)
    grid = (pl.cdiv(E_p, tep),)

    # ---- inputs: cast (no-op if already bf16) + packed reshape; NO padding --
    def prep(x, width):
        if x.dtype != compute_dtype:
            x = x.astype(compute_dtype)
        return x.reshape(E_p, pack * width)

    e = prep(edge_feat, e_dim)
    hs = prep(src_h, h_dim)
    hd = prep(dst_h, h_dim)

    # ---- weights: split W1 into its e|src|dst row blocks (matches the concat
    # ordering), then pack-fold each block diagonally.
    wc = compute_dtype
    w1e, w1s, w1d = w1[:e_dim], w1[e_dim:e_dim + h_dim], w1[e_dim + h_dim:]
    w1p = jnp.concatenate([_block_diag(w1e.astype(wc), pack),
                           _block_diag(w1s.astype(wc), pack),
                           _block_diag(w1d.astype(wc), pack)], axis=0)
    w2p = _block_diag(w2.astype(wc), pack)
    w3p = _block_diag(w3.astype(wc), pack)
    # biases stay f32 (added to the f32 accumulators), one row each.
    b1p = jnp.tile(b1.astype(jnp.float32), pack).reshape(1, pack * hid1)
    b2p = jnp.tile(b2.astype(jnp.float32), pack).reshape(1, pack * hid2)
    b3p = jnp.tile(b3.astype(jnp.float32), pack).reshape(1, pack * out_dim)

    full = lambda i: (0, 0)  # weights/biases: one full block, resident across grid
    grid_spec = pltpu.PrefetchScalarGridSpec(
        num_scalar_prefetch=0,
        grid=grid,
        in_specs=[
            pl.BlockSpec((tep, pack * e_dim), lambda i: (i, 0)),
            pl.BlockSpec((tep, pack * h_dim), lambda i: (i, 0)),
            pl.BlockSpec((tep, pack * h_dim), lambda i: (i, 0)),
            pl.BlockSpec((pack * in_dim, pack * hid1), full),
            pl.BlockSpec((1, pack * hid1), full),
            pl.BlockSpec((pack * hid1, pack * hid2), full),
            pl.BlockSpec((1, pack * hid2), full),
            pl.BlockSpec((pack * hid2, pack * out_dim), full),
            pl.BlockSpec((1, pack * out_dim), full),
        ],
        out_specs=pl.BlockSpec((tep, pack * out_dim), lambda i: (i, 0)),
    )

    bpe = jnp.dtype(compute_dtype).itemsize
    w_elems = in_dim * hid1 + hid1 * hid2 + hid2 * out_dim
    flops = 2 * E * w_elems
    bytes_accessed = (E * in_dim * bpe
                      + E * out_dim * jnp.dtype(out_dtype).itemsize
                      + (pack ** 2) * w_elems * bpe)

    out = pl.pallas_call(
        _edge_mlp_kernel,
        out_shape=jax.ShapeDtypeStruct((E_p, pack * out_dim), out_dtype),
        grid_spec=grid_spec,
        compiler_params=pltpu.CompilerParams(
            dimension_semantics=("parallel",),
            vmem_limit_bytes=32 * 1024 * 1024),
        cost_estimate=pl.CostEstimate(
            flops=int(flops), transcendentals=0,
            bytes_accessed=int(bytes_accessed)),
    )(e, hs, hd, w1p, b1p, w2p, b2p, w3p, b3p)
    # Unpack: free row-major reinterpretation in HBM.
    return out.reshape(E, out_dim)


def dti_conv_graph3_forward(edge_feat, node_feat, src, dst, params, *,
                            tile_e=8192, compute_dtype=jnp.bfloat16,
                            out_dtype=None):
    """Pallas equivalent of DTIConvGraph3.forward on an explicit edge list.

    edge_feat: [E, e_dim]   (bg.edata['e'])
    node_feat: [N, h_dim]   (bg.ndata['h'])
    src, dst:  [E] int32 edge endpoint indices
    """
    # TODO(synk): DGL graph plumbing (local_scope / apply_edges) has no Pallas
    # equivalent; the graph is represented by explicit src/dst index arrays and
    # the per-edge endpoint gather stays in XLA (irregular, cheap).
    if out_dtype is None:
        out_dtype = edge_feat.dtype
    # Cast to the MXU compute dtype BEFORE the gather so every downstream copy
    # (gather outputs, reshapes) is half-width in HBM.
    nf = node_feat.astype(compute_dtype)
    ef = edge_feat.astype(compute_dtype)
    src_h = nf[src]
    dst_h = nf[dst]
    return edge_mlp_pallas(ef, src_h, dst_h, params, tile_e=tile_e,
                           compute_dtype=compute_dtype, out_dtype=out_dtype)


def init_params(key, in_dim, out_dim, dtype=jnp.float32):
    """nn.Linear-style init (uniform +-1/sqrt(fan_in)); weights stored [in, out]."""
    ks = jax.random.split(key, 6)

    def lin(kw, kb, fan_in, fan_out):
        bound = 1.0 / jnp.sqrt(fan_in)
        w = jax.random.uniform(kw, (fan_in, fan_out), dtype, -bound, bound)
        b = jax.random.uniform(kb, (fan_out,), dtype, -bound, bound)
        return w, b

    return (
        lin(ks[0], ks[1], in_dim, out_dim),
        lin(ks[2], ks[3], out_dim, out_dim),
        lin(ks[4], ks[5], out_dim, out_dim),
    )


def _reference(edge_feat, node_feat, src, dst, params):
    # f32 reference matching the PyTorch module (LeakyReLU after every Linear).
    x = jnp.concatenate([edge_feat, node_feat[src], node_feat[dst]], axis=1)
    for (w, b) in params:
        x = x @ w + b
        x = jnp.where(x > 0, x, LEAKY_SLOPE * x)
    return x


if __name__ == "__main__":
    key = jax.random.PRNGKey(0)
    k_e, k_h, k_s, k_d, k_p = jax.random.split(key, 5)

    # small synthetic graph
    N = 64          # nodes
    E = 256         # edges
    e_dim = 16      # edge feature dim
    h_dim = 24      # node feature dim
    in_dim = e_dim + 2 * h_dim   # 64
    out_dim = 64

    edge_feat = jax.random.normal(k_e, (E, e_dim), jnp.float32)
    node_feat = jax.random.normal(k_h, (N, h_dim), jnp.float32)
    src = jax.random.randint(k_s, (E,), 0, N, jnp.int32)
    dst = jax.random.randint(k_d, (E,), 0, N, jnp.int32)

    params = init_params(k_p, in_dim, out_dim)

    out = dti_conv_graph3_forward(edge_feat, node_feat, src, dst, params)
    out = jax.block_until_ready(out)

    ref = _reference(edge_feat, node_feat, src, dst, params)
    assert out.shape == (E, out_dim)
    # bf16 matmul inputs / bf16 inter-layer activations with f32 accumulation
    # -> loosened tolerance vs the f32 reference.
    assert jnp.allclose(out, ref, atol=5e-2, rtol=5e-2), "mismatch vs reference"

    print("KERNEL_OK")
</pallas_src>

<mosaic_0001>
module attributes {stable_mosaic.version = 11 : i64} {
  func.func @_edge_mlp_kernel(%arg0: i32, %arg1: memref<128x32xbf16, #tpu.memory_space<vmem>>, %arg2: memref<128x48xbf16, #tpu.memory_space<vmem>>, %arg3: memref<128x48xbf16, #tpu.memory_space<vmem>>, %arg4: memref<128x128xbf16, #tpu.memory_space<vmem>>, %arg5: memref<1x128xf32, #tpu.memory_space<vmem>>, %arg6: memref<128x128xbf16, #tpu.memory_space<vmem>>, %arg7: memref<1x128xf32, #tpu.memory_space<vmem>>, %arg8: memref<128x128xbf16, #tpu.memory_space<vmem>>, %arg9: memref<1x128xf32, #tpu.memory_space<vmem>>, %arg10: memref<128x128xf32, #tpu.memory_space<vmem>>) attributes {dimension_semantics = [#tpu.dimension_semantics<parallel>], iteration_bounds = array<i64: 1>, scalar_prefetch = 0 : i64, scratch_operands = 0 : i64, tpu.core_type = #tpu.core_type<tc>, window_params = [{transform_indices = @transform_0, window_bounds = array<i64: 128, 32>}, {transform_indices = @transform_1, window_bounds = array<i64: 128, 48>}, {transform_indices = @transform_2, window_bounds = array<i64: 128, 48>}, {pipeline_mode = #tpu.pipeline_mode<synchronous>, transform_indices = @transform_3, window_bounds = array<i64: 128, 128>}, {pipeline_mode = #tpu.pipeline_mode<synchronous>, transform_indices = @transform_4, window_bounds = array<i64: 1, 128>}, {pipeline_mode = #tpu.pipeline_mode<synchronous>, transform_indices = @transform_5, window_bounds = array<i64: 128, 128>}, {pipeline_mode = #tpu.pipeline_mode<synchronous>, transform_indices = @transform_6, window_bounds = array<i64: 1, 128>}, {pipeline_mode = #tpu.pipeline_mode<synchronous>, transform_indices = @transform_7, window_bounds = array<i64: 128, 128>}, {pipeline_mode = #tpu.pipeline_mode<synchronous>, transform_indices = @transform_8, window_bounds = array<i64: 1, 128>}, {transform_indices = @transform_9, window_bounds = array<i64: 128, 128>}]} {
    %c0 = arith.constant 0 : index
    %c0_0 = arith.constant 0 : index
    %0 = vector.load %arg1[%c0, %c0_0] : memref<128x32xbf16, #tpu.memory_space<vmem>>, vector<128x32xbf16>
    %c0_1 = arith.constant 0 : index
    %c0_2 = arith.constant 0 : index
    %1 = vector.load %arg2[%c0_1, %c0_2] : memref<128x48xbf16, #tpu.memory_space<vmem>>, vector<128x48xbf16>
    %c0_3 = arith.constant 0 : index
    %c0_4 = arith.constant 0 : index
    %2 = vector.load %arg3[%c0_3, %c0_4] : memref<128x48xbf16, #tpu.memory_space<vmem>>, vector<128x48xbf16>
    %3 = tpu.concatenate %0, %1, %2 in 1 : vector<128x32xbf16>, vector<128x48xbf16>, vector<128x48xbf16> -> vector<128x128xbf16>
    %c0_5 = arith.constant 0 : index
    %c0_6 = arith.constant 0 : index
    %4 = vector.load %arg4[%c0_5, %c0_6] : memref<128x128xbf16, #tpu.memory_space<vmem>>, vector<128x128xbf16>
    %cst = arith.constant dense<0.000000e+00> : vector<128x128xf32>
    %5 = tpu.matmul %3, %4, %cst {dimension_numbers = #tpu.dot_dimension_numbers<[1], [0], [0], [1], [0, 0, 1, 1], [], []>} : vector<128x128xbf16>, vector<128x128xbf16>, vector<128x128xf32> -> vector<128x128xf32>
    %c0_7 = arith.constant 0 : index
    %c0_8 = arith.constant 0 : index
    %6 = vector.load %arg5[%c0_7, %c0_8] : memref<1x128xf32, #tpu.memory_space<vmem>>, vector<1x128xf32>
    %7 = vector.broadcast %6 : vector<1x128xf32> to vector<128x128xf32>
    %8 = arith.addf %5, %7 : vector<128x128xf32>
    %cst_9 = arith.constant 0.00999999977 : f32
    %9 = vector.broadcast %cst_9 : f32 to vector<128x128xf32>
    %10 = arith.mulf %9, %8 : vector<128x128xf32>
    %11 = arith.maximumf %8, %10 : vector<128x128xf32>
    %12 = arith.truncf %11 : vector<128x128xf32> to vector<128x128xbf16>
    %c0_10 = arith.constant 0 : index
    %c0_11 = arith.constant 0 : index
    %13 = vector.load %arg6[%c0_10, %c0_11] : memref<128x128xbf16, #tpu.memory_space<vmem>>, vector<128x128xbf16>
    %cst_12 = arith.constant dense<0.000000e+00> : vector<128x128xf32>
    %14 = tpu.matmul %12, %13, %cst_12 {dimension_numbers = #tpu.dot_dimension_numbers<[1], [0], [0], [1], [0, 0, 1, 1], [], []>} : vector<128x128xbf16>, vector<128x128xbf16>, vector<128x128xf32> -> vector<128x128xf32>
    %c0_13 = arith.constant 0 : index
    %c0_14 = arith.constant 0 : index
    %15 = vector.load %arg7[%c0_13, %c0_14] : memref<1x128xf32, #tpu.memory_space<vmem>>, vector<1x128xf32>
    %16 = vector.broadcast %15 : vector<1x128xf32> to vector<128x128xf32>
    %17 = arith.addf %14, %16 : vector<128x128xf32>
    %cst_15 = arith.constant 0.00999999977 : f32
    %18 = vector.broadcast %cst_15 : f32 to vector<128x128xf32>
    %19 = arith.mulf %18, %17 : vector<128x128xf32>
    %20 = arith.maximumf %17, %19 : vector<128x128xf32>
    %21 = arith.truncf %20 : vector<128x128xf32> to vector<128x128xbf16>
    %c0_16 = arith.constant 0 : index
    %c0_17 = arith.constant 0 : index
    %22 = vector.load %arg8[%c0_16, %c0_17] : memref<128x128xbf16, #tpu.memory_space<vmem>>, vector<128x128xbf16>
    %cst_18 = arith.constant dense<0.000000e+00> : vector<128x128xf32>
    %23 = tpu.matmul %21, %22, %cst_18 {dimension_numbers = #tpu.dot_dimension_numbers<[1], [0], [0], [1], [0, 0, 1, 1], [], []>} : vector<128x128xbf16>, vector<128x128xbf16>, vector<128x128xf32> -> vector<128x128xf32>
    %c0_19 = arith.constant 0 : index
    %c0_20 = arith.constant 0 : index
    %24 = vector.load %arg9[%c0_19, %c0_20] : memref<1x128xf32, #tpu.memory_space<vmem>>, vector<1x128xf32>
    %25 = vector.broadcast %24 : vector<1x128xf32> to vector<128x128xf32>
    %26 = arith.addf %23, %25 : vector<128x128xf32>
    %cst_21 = arith.constant 0.00999999977 : f32
    %27 = vector.broadcast %cst_21 : f32 to vector<128x128xf32>
    %28 = arith.mulf %27, %26 : vector<128x128xf32>
    %29 = arith.maximumf %26, %28 : vector<128x128xf32>
    %c0_22 = arith.constant 0 : index
    %c0_23 = arith.constant 0 : index
    %30 = vector.load %arg10[%c0_22, %c0_23] : memref<128x128xf32, #tpu.memory_space<vmem>>, vector<128x128xf32>
    tpu.vector_store %arg10[%c0_22, %c0_23], %29 {strides = array<i32>} : memref<128x128xf32, #tpu.memory_space<vmem>>, vector<128x128xf32>,
    return
  }
  func.func @transform_0(%arg0: i32) -> (i32, i32) {
    %c0_i32 = arith.constant 0 : i32
    %c0_i32_0 = arith.constant 0 : i32
    return %arg0, %c0_i32 : i32, i32
  }
  func.func @transform_1(%arg0: i32) -> (i32, i32) {
    %c0_i32 = arith.constant 0 : i32
    %c0_i32_0 = arith.constant 0 : i32
    return %arg0, %c0_i32 : i32, i32
  }
  func.func @transform_2(%arg0: i32) -> (i32, i32) {
    %c0_i32 = arith.constant 0 : i32
    %c0_i32_0 = arith.constant 0 : i32
    return %arg0, %c0_i32 : i32, i32
  }
  func.func @transform_3(%arg0: i32) -> (i32, i32) {
    %c0_i32 = arith.constant 0 : i32
    %c0_i32_0 = arith.constant 0 : i32
    %c0_i32_1 = arith.constant 0 : i32
    return %c0_i32, %c0_i32_0 : i32, i32
  }
  func.func @transform_4(%arg0: i32) -> (i32, i32) {
    %c0_i32 = arith.constant 0 : i32
    %c0_i32_0 = arith.constant 0 : i32
    %c0_i32_1 = arith.constant 0 : i32
    return %c0_i32, %c0_i32_0 : i32, i32
  }
  func.func @transform_5(%arg0: i32) -> (i32, i32) {
    %c0_i32 = arith.constant 0 : i32
    %c0_i32_0 = arith.constant 0 : i32
    %c0_i32_1 = arith.constant 0 : i32
    return %c0_i32, %c0_i32_0 : i32, i32
  }
  func.func @transform_6(%arg0: i32) -> (i32, i32) {
    %c0_i32 = arith.constant 0 : i32
    %c0_i32_0 = arith.constant 0 : i32
    %c0_i32_1 = arith.constant 0 : i32
    return %c0_i32, %c0_i32_0 : i32, i32
  }
  func.func @transform_7(%arg0: i32) -> (i32, i32) {
    %c0_i32 = arith.constant 0 : i32
    %c0_i32_0 = arith.constant 0 : i32
    %c0_i32_1 = arith.constant 0 : i32
    return %c0_i32, %c0_i32_0 : i32, i32
  }
  func.func @transform_8(%arg0: i32) -> (i32, i32) {
    %c0_i32 = arith.constant 0 : i32
    %c0_i32_0 = arith.constant 0 : i32
    %c0_i32_1 = arith.constant 0 : i32
    return %c0_i32, %c0_i32_0 : i32, i32
  }
  func.func @transform_9(%arg0: i32) -> (i32, i32) {
    %c0_i32 = arith.constant 0 : i32
    %c0_i32_0 = arith.constant 0 : i32
    return %arg0, %c0_i32 : i32, i32
  }
}

</mosaic_0001>

<llo_original>
// kernel: tpu_custom_call.1
$region0: #{tpu_custom_call.1}
  #allocation0 [shape = 'u32[]', space=smem, size = 0x4, offset = 0x4, fixed_abs, tag = 'smem constant byte address 0x4 - core index']
  #allocation1 [shape = 'u32[144,128]{1,0:T(1,128)}', space=vmem, size = 0x12000, scoped, tag = 'internal scratch']
  %s0 = inlined_call_operand.vmem [shape: bf16[128,32], index: 0, kind: input, shape index: {}]
  %s1 = inlined_call_operand.vmem [shape: bf16[128,48], index: 1, kind: input, shape index: {}]
  %s2 = inlined_call_operand.vmem [shape: bf16[128,48], index: 2, kind: input, shape index: {}]
  %s3 = inlined_call_operand.vmem [shape: bf16[128,128], index: 3, kind: input, shape index: {}]
  %s4 = inlined_call_operand.vmem [shape: f32[1,128], index: 4, kind: input, shape index: {}]
  %s5 = inlined_call_operand.vmem [shape: bf16[128,128], index: 5, kind: input, shape index: {}]
  %s6 = inlined_call_operand.vmem [shape: f32[1,128], index: 6, kind: input, shape index: {}]
  %s7 = inlined_call_operand.vmem [shape: bf16[128,128], index: 7, kind: input, shape index: {}]
  %s8 = inlined_call_operand.vmem [shape: f32[1,128], index: 8, kind: input, shape index: {}]
  %s9 = inlined_call_operand.hbm [shape: f32[128,128], index: 9, kind: output, shape index: {}]
  %s10 = sld [smem:[#allocation0]]
  $region46: #{tpu_custom_call.1} parent=0
    _
  %s12 = ssub.s32 1, %s10
  %s13 = scalar_select 0, %s12, %s10
  $region1: #{tpu_custom_call.1} parent=0
    #allocation2 [shape = 'u8[65536]{0}', space=vmem, size = 0x10000, scoped, tag = 'output window, operand 0, single buffered']
    #allocation3 [shape = 's32[1]{0}', space=sflag, size = 0x4, scoped, tag = 'scoped memory for tpu_custom_call.1']
    %14 = vsyncpa [#allocation3], 0
    // Predicated region
    $region2: #{tpu_custom_call.1} parent=1 // pred_check
      _
    $region3: #{tpu_custom_call.1} parent=1 // pred_check_branch
      %16 = sbr.rel (0) target = $region5
    $region4: #{tpu_custom_call.1} parent=1 // pred_region
      _
    $region5: #{tpu_custom_call.1} parent=1 // pred_fallthru
      _
    // Predicated region
    $region6: #{tpu_custom_call.1} parent=1 // pred_check
      _
    $region7: #{tpu_custom_call.1} parent=1 // pred_check_branch
      %18 = sbr.rel (0) target = $region9
    $region8: #{tpu_custom_call.1} parent=1 // pred_region
      _
    $region9: #{tpu_custom_call.1} parent=1 // pred_fallthru
      _
    // Predicated region
    $region10: #{tpu_custom_call.1} parent=1 // pred_check
      _
    $region11: #{tpu_custom_call.1} parent=1 // pred_check_branch
      %20 = sbr.rel (0) target = $region13
    $region12: #{tpu_custom_call.1} parent=1 // pred_region
      _
    $region13: #{tpu_custom_call.1} parent=1 // pred_fallthru
      _
    // Predicated region
    $region14: #{tpu_custom_call.1} parent=1 // pred_check
      _
    $region15: #{tpu_custom_call.1} parent=1 // pred_check_branch
      %22 = sbr.rel (0) target = $region17
    $region16: #{tpu_custom_call.1} parent=1 // pred_region
      _
    $region17: #{tpu_custom_call.1} parent=1 // pred_fallthru
      _
    // Predicated region
    $region18: #{tpu_custom_call.1} parent=1 // pred_check
      _
    $region19: #{tpu_custom_call.1} parent=1 // pred_check_branch
      %24 = sbr.rel (0) target = $region21
    $region20: #{tpu_custom_call.1} parent=1 // pred_region
      _
    $region21: #{tpu_custom_call.1} parent=1 // pred_fallthru
      _
    // Predicated region
    $region22: #{tpu_custom_call.1} parent=1 // pred_check
      _
    $region23: #{tpu_custom_call.1} parent=1 // pred_check_branch
      %26 = sbr.rel (0) target = $region25
    $region24: #{tpu_custom_call.1} parent=1 // pred_region
      _
    $region25: #{tpu_custom_call.1} parent=1 // pred_fallthru
      _
    // Predicated region
    $region26: #{tpu_custom_call.1} parent=1 // pred_check
      _
    $region27: #{tpu_custom_call.1} parent=1 // pred_check_branch
      %28 = sbr.rel (0) target = $region29
    $region28: #{tpu_custom_call.1} parent=1 // pred_region
      _
    $region29: #{tpu_custom_call.1} parent=1 // pred_fallthru
      _
    // Predicated region
    $region30: #{tpu_custom_call.1} parent=1 // pred_check
      _
    $region31: #{tpu_custom_call.1} parent=1 // pred_check_branch
      %30 = sbr.rel (0) target = $region33
    $region32: #{tpu_custom_call.1} parent=1 // pred_region
      _
    $region33: #{tpu_custom_call.1} parent=1 // pred_fallthru
      _
    // Predicated region
    $region34: #{tpu_custom_call.1} parent=1 // pred_check
      _
    $region35: #{tpu_custom_call.1} parent=1 // pred_check_branch
      %32 = sbr.rel (0) target = $region37
    $region36: #{tpu_custom_call.1} parent=1 // pred_region
      _
    $region37: #{tpu_custom_call.1} parent=1 // pred_fallthru
      _
    %v34 = vld [vmem:[%s0] sm:$0xf]
    %v35 = vld [vmem:[%s0 + $0x4] sm:$0xf]
    %v36 = vld [vmem:[%s0 + $0x8] sm:$0xf]
    %v37 = vld [vmem:[%s0 + $0xc] sm:$0xf]
    %v38 = vld [vmem:[%s0 + $0x10] sm:$0xf]
    %v39 = vld [vmem:[%s0 + $0x14] sm:$0xf]
    %v40 = vld [vmem:[%s0 + $0x18] sm:$0xf]
    %v41 = vld [vmem:[%s0 + $0x1c] sm:$0xf]
    %v42 = vld [vmem:[%s0 + $0x20] sm:$0xf]
    %v43 = vld [vmem:[%s0 + $0x24] sm:$0xf]
    %v44 = vld [vmem:[%s0 + $0x28] sm:$0xf]
    %v45 = vld [vmem:[%s0 + $0x2c] sm:$0xf]
    %v46 = vld [vmem:[%s0 + $0x30] sm:$0xf]
    %v47 = vld [vmem:[%s0 + $0x34] sm:$0xf]
    %v48 = vld [vmem:[%s0 + $0x38] sm:$0xf]
    %v49 = vld [vmem:[%s0 + $0x3c] sm:$0xf]
    %v50 = vld [vmem:[%s1] sm:$0xf]
    %v51 = vld [vmem:[%s1 + $0x4] sm:$0xf]
    %v52 = vld [vmem:[%s1 + $0x8] sm:$0xf]
    %v53 = vld [vmem:[%s1 + $0xc] sm:$0xf]
    %v54 = vld [vmem:[%s1 + $0x10] sm:$0xf]
    %v55 = vld [vmem:[%s1 + $0x14] sm:$0xf]
    %v56 = vld [vmem:[%s1 + $0x18] sm:$0xf]
    %v57 = vld [vmem:[%s1 + $0x1c] sm:$0xf]
    %v58 = vld [vmem:[%s1 + $0x20] sm:$0xf]
    %v59 = vld [vmem:[%s1 + $0x24] sm:$0xf]
    %v60 = vld [vmem:[%s1 + $0x28] sm:$0xf]
    %v61 = vld [vmem:[%s1 + $0x2c] sm:$0xf]
    %v62 = vld [vmem:[%s1 + $0x30] sm:$0xf]
    %v63 = vld [vmem:[%s1 + $0x34] sm:$0xf]
    %v64 = vld [vmem:[%s1 + $0x38] sm:$0xf]
    %v65 = vld [vmem:[%s1 + $0x3c] sm:$0xf]
    %v66 = vld [vmem:[%s2] sm:$0xf]
    %v67 = vld [vmem:[%s2 + $0x4] sm:$0xf]
    %v68 = vld [vmem:[%s2 + $0x8] sm:$0xf]
    %v69 = vld [vmem:[%s2 + $0xc] sm:$0xf]
    %v70 = vld [vmem:[%s2 + $0x10] sm:$0xf]
    %v71 = vld [vmem:[%s2 + $0x14] sm:$0xf]
    %v72 = vld [vmem:[%s2 + $0x18] sm:$0xf]
    %v73 = vld [vmem:[%s2 + $0x1c] sm:$0xf]
    %v74 = vld [vmem:[%s2 + $0x20] sm:$0xf]
    %v75 = vld [vmem:[%s2 + $0x24] sm:$0xf]
    %v76 = vld [vmem:[%s2 + $0x28] sm:$0xf]
    %v77 = vld [vmem:[%s2 + $0x2c] sm:$0xf]
    %v78 = vld [vmem:[%s2 + $0x30] sm:$0xf]
    %v79 = vld [vmem:[%s2 + $0x34] sm:$0xf]
    %v80 = vld [vmem:[%s2 + $0x38] sm:$0xf]
    %v81 = vld [vmem:[%s2 + $0x3c] sm:$0xf]
    %v98 = vunpack.c.l.b16 %v34
    %v99 = vunpack.c.l.b16 %v35
    %v100 = vunpack.c.l.b16 %v36
    %v101 = vunpack.c.l.b16 %v37
    %v102 = vunpack.c.l.b16 %v38
    %v103 = vunpack.c.l.b16 %v39
    %v104 = vunpack.c.l.b16 %v40
    %v105 = vunpack.c.l.b16 %v41
    %v106 = vunpack.c.l.b16 %v42
    %v107 = vunpack.c.l.b16 %v43
    %v108 = vunpack.c.l.b16 %v44
    %v109 = vunpack.c.l.b16 %v45
    %v110 = vunpack.c.l.b16 %v46
    %v111 = vunpack.c.l.b16 %v47
    %v112 = vunpack.c.l.b16 %v48
    %v113 = vunpack.c.l.b16 %v49
    %v114 = vpack.c.b16 %v99, %v98
    %v115 = vpack.c.b16 %v101, %v100
    %v116 = vpack.c.b16 %v103, %v102
    %v117 = vpack.c.b16 %v105, %v104
    %v118 = vpack.c.b16 %v107, %v106
    %v119 = vpack.c.b16 %v109, %v108
    %v120 = vpack.c.b16 %v111, %v110
    %v121 = vpack.c.b16 %v113, %v112
    %v138 = vunpack.c.l.b16 %v50
    %v139 = vunpack.c.l.b16 %v51
    %v140 = vunpack.c.l.b16 %v52
    %v141 = vunpack.c.l.b16 %v53
    %v142 = vunpack.c.l.b16 %v54
    %v143 = vunpack.c.l.b16 %v55
    %v144 = vunpack.c.l.b16 %v56
    %v145 = vunpack.c.l.b16 %v57
    %v146 = vunpack.c.l.b16 %v58
    %v147 = vunpack.c.l.b16 %v59
    %v148 = vunpack.c.l.b16 %v60
    %v149 = vunpack.c.l.b16 %v61
    %v150 = vunpack.c.l.b16 %v62
    %v151 = vunpack.c.l.b16 %v63
    %v152 = vunpack.c.l.b16 %v64
    %v153 = vunpack.c.l.b16 %v65
    %v154 = vpack.c.b16 %v139, %v138
    %v155 = vpack.c.b16 %v141, %v140
    %v156 = vpack.c.b16 %v143, %v142
    %v157 = vpack.c.b16 %v145, %v144
    %v158 = vpack.c.b16 %v147, %v146
    %v159 = vpack.c.b16 %v149, %v148
    %v160 = vpack.c.b16 %v151, %v150
    %v161 = vpack.c.b16 %v153, %v152
    %162 = vrot.lane.b32.xlu0 %v154, 32
    %v163 = vpop.permute.xlu0 %162
    %164 = vrot.lane.b32.xlu0 %v155, 32
    %v165 = vpop.permute.xlu0 %164
    %166 = vrot.lane.b32.xlu0 %v156, 32
    %v167 = vpop.permute.xlu0 %166
    %168 = vrot.lane.b32.xlu0 %v157, 32
    %v169 = vpop.permute.xlu0 %168
    %170 = vrot.lane.b32.xlu0 %v158, 32
    %v171 = vpop.permute.xlu0 %170
    %172 = vrot.lane.b32.xlu0 %v159, 32
    %v173 = vpop.permute.xlu0 %172
    %174 = vrot.lane.b32.xlu0 %v160, 32
    %v175 = vpop.permute.xlu0 %174
    %176 = vrot.lane.b32.xlu0 %v161, 32
    %v177 = vpop.permute.xlu0 %176
    %v194 = vunpack.c.l.b16 %v66
    %v195 = vunpack.c.l.b16 %v67
    %v196 = vunpack.c.l.b16 %v68
    %v197 = vunpack.c.l.b16 %v69
    %v198 = vunpack.c.l.b16 %v70
    %v199 = vunpack.c.l.b16 %v71
    %v200 = vunpack.c.l.b16 %v72
    %v201 = vunpack.c.l.b16 %v73
    %v202 = vunpack.c.l.b16 %v74
    %v203 = vunpack.c.l.b16 %v75
    %v204 = vunpack.c.l.b16 %v76
    %v205 = vunpack.c.l.b16 %v77
    %v206 = vunpack.c.l.b16 %v78
    %v207 = vunpack.c.l.b16 %v79
    %v208 = vunpack.c.l.b16 %v80
    %v209 = vunpack.c.l.b16 %v81
    %v210 = vpack.c.b16 %v195, %v194
    %v211 = vpack.c.b16 %v197, %v196
    %v212 = vpack.c.b16 %v199, %v198
    %v213 = vpack.c.b16 %v201, %v200
    %v214 = vpack.c.b16 %v203, %v202
    %v215 = vpack.c.b16 %v205, %v204
    %v216 = vpack.c.b16 %v207, %v206
    %v217 = vpack.c.b16 %v209, %v208
    %218 = vrot.lane.b32.xlu0 %v210, 80
    %v219 = vpop.permute.xlu0 %218
    %220 = vrot.lane.b32.xlu0 %v211, 80
    %v221 = vpop.permute.xlu0 %220
    %222 = vrot.lane.b32.xlu0 %v212, 80
    %v223 = vpop.permute.xlu0 %222
    %224 = vrot.lane.b32.xlu0 %v213, 80
    %v225 = vpop.permute.xlu0 %224
    %226 = vrot.lane.b32.xlu0 %v214, 80
    %v227 = vpop.permute.xlu0 %226
    %228 = vrot.lane.b32.xlu0 %v215, 80
    %v229 = vpop.permute.xlu0 %228
    %230 = vrot.lane.b32.xlu0 %v216, 80
    %v231 = vpop.permute.xlu0 %230
    %232 = vrot.lane.b32.xlu0 %v217, 80
    %v233 = vpop.permute.xlu0 %232
    %vm234 = vcmask 261120
    %v237 = vsel %vm234, %v114, %v163
    %v240 = vsel %vm234, %v115, %v165
    %v243 = vsel %vm234, %v116, %v167
    %v246 = vsel %vm234, %v117, %v169
    %v249 = vsel %vm234, %v118, %v171
    %v252 = vsel %vm234, %v119, %v173
    %v255 = vsel %vm234, %v120, %v175
    %v258 = vsel %vm234, %v121, %v177
    %vm259 = vcmask 654336
    %v261 = vsel %vm259, %v237, %v219
    %v264 = vsel %vm259, %v240, %v221
    %v267 = vsel %vm259, %v243, %v223
    %v270 = vsel %vm259, %v246, %v225
    %v273 = vsel %vm259, %v249, %v227
    %v276 = vsel %vm259, %v252, %v229
    %v279 = vsel %vm259, %v255, %v231
    %v282 = vsel %vm259, %v258, %v233
    %v284 = vld [vmem:[%s3] sm:$0xf]
    %v285 = vld [vmem:[%s3 + $0x4] sm:$0xf]
    %v286 = vld [vmem:[%s3 + $0x8] sm:$0xf]
    %v287 = vld [vmem:[%s3 + $0xc] sm:$0xf]
    %v288 = vld [vmem:[%s3 + $0x10] sm:$0xf]
    %v289 = vld [vmem:[%s3 + $0x14] sm:$0xf]
    %v290 = vld [vmem:[%s3 + $0x18] sm:$0xf]
    %v291 = vld [vmem:[%s3 + $0x1c] sm:$0xf]
    %v292 = vld [vmem:[%s3 + $0x20] sm:$0xf]
    %v293 = vld [vmem:[%s3 + $0x24] sm:$0xf]
    %v294 = vld [vmem:[%s3 + $0x28] sm:$0xf]
    %v295 = vld [vmem:[%s3 + $0x2c] sm:$0xf]
    %v296 = vld [vmem:[%s3 + $0x30] sm:$0xf]
    %v297 = vld [vmem:[%s3 + $0x34] sm:$0xf]
    %v298 = vld [vmem:[%s3 + $0x38] sm:$0xf]
    %v299 = vld [vmem:[%s3 + $0x3c] sm:$0xf]
    %v300 = vld [vmem:[%s4] sm:$0x1]
    %v302 = vlaneseq
    %v303 = vshrl.u32 %v302, 7
    %v304 = vsub.s32 0, %v303
    %v305 = vrot.slane %v300, %v304
    %v323 = vunpack.c.l.b16 %v284
    %v324 = vunpack.c.l.b16 %v285
    %v325 = vunpack.c.l.b16 %v286
    %v326 = vunpack.c.l.b16 %v287
    %v327 = vunpack.c.l.b16 %v288
    %v328 = vunpack.c.l.b16 %v289
    %v329 = vunpack.c.l.b16 %v290
    %v330 = vunpack.c.l.b16 %v291
    %v331 = vunpack.c.l.b16 %v292
    %v332 = vunpack.c.l.b16 %v293
    %v333 = vunpack.c.l.b16 %v294
    %v334 = vunpack.c.l.b16 %v295
    %v335 = vunpack.c.l.b16 %v296
    %v336 = vunpack.c.l.b16 %v297
    %v337 = vunpack.c.l.b16 %v298
    %v338 = vunpack.c.l.b16 %v299
    %v339 = vpack.c.b16 %v324, %v323
    %v340 = vpack.c.b16 %v326, %v325
    %v341 = vpack.c.b16 %v328, %v327
    %v342 = vpack.c.b16 %v330, %v329
    %v343 = vpack.c.b16 %v332, %v331
    %v344 = vpack.c.b16 %v334, %v333
    %v345 = vpack.c.b16 %v336, %v335
    %v346 = vpack.c.b16 %v338, %v337
    %355 = vmatprep.subr.bf16.mxu0 0
    %356 = vmatpush1.bf16.msra.mxu0 %v339
    %357 = vmatprep.subr.bf16.mxu0 0
    %358 = vmatpush1.bf16.msra.mxu0 %v340
    %359 = vmatprep.subr.bf16.mxu0 0
    %360 = vmatpush1.bf16.msra.mxu0 %v341
    %361 = vmatprep.subr.bf16.mxu0 0
    %362 = vmatpush1.bf16.msra.mxu0 %v342
    %363 = vmatprep.subr.bf16.mxu0 0
    %364 = vmatpush1.bf16.msra.mxu0 %v343
    %365 = vmatprep.subr.bf16.mxu0 0
    %366 = vmatpush1.bf16.msra.mxu0 %v344
    %367 = vmatprep.subr.bf16.mxu0 0
    %368 = vmatpush1.bf16.msra.mxu0 %v345
    %369 = vmatprep.subr.bf16.mxu0 0
    %370 = vmatpush1.bf16.msra.mxu0 %v346
    %371 = vmatprep.subr.bf16.mxu0 0
    %372 = vmatpush1.bf16.msra.mxu0 0
    %373 = vmatprep.subr.bf16.mxu0 0
    %374 = vmatpush1.bf16.msra.mxu0 0
    %375 = vmatprep.subr.bf16.mxu0 0
    %376 = vmatpush1.bf16.msra.mxu0 0
    %377 = vmatprep.subr.bf16.mxu0 0
    %378 = vmatpush1.bf16.msra.mxu0 0
    %379 = vmatprep.subr.bf16.mxu0 0
    %380 = vmatpush1.bf16.msra.mxu0 0
    %381 = vmatprep.subr.bf16.mxu0 0
    %382 = vmatpush1.bf16.msra.mxu0 0
    %383 = vmatprep.subr.bf16.mxu0 0
    %384 = vmatpush1.bf16.msra.mxu0 0
    %385 = vmatprep.subr.bf16.mxu0 0
    %386 = vmatpush1.bf16.msra.mxu0 0
    %387 = vmatprep.mubr.bf16.mxu0 0
    %388 = vmatmul.mubr.bf16.gmra.mrb[0].mxu0 %v261
    %v389 = vpop.f32.mrb[0].mxu0
    %v390 = vadd.f32 %v305, %v389
    %v391 = vpop.f32.mrb[0].mxu0
    %v392 = vpop.f32.mrb[0].mxu0
    %v393 = vadd.f32 %v305, %v392
    %v394 = vpop.f32.mrb[0].mxu0
    %395 = vmatprep.mubr.bf16.mxu0 0
    %396 = vmatmul.mubr.bf16.gmra.mrb[0].mxu0 %v264
    %v397 = vpop.f32.mrb[0].mxu0
    %v398 = vadd.f32 %v305, %v397
    %v399 = vpop.f32.mrb[0].mxu0
    %v400 = vpop.f32.mrb[0].mxu0
    %v401 = vadd.f32 %v305, %v400
    %v402 = vpop.f32.mrb[0].mxu0
    %403 = vmatprep.mubr.bf16.mxu0 0
    %404 = vmatmul.mubr.bf16.gmra.mrb[0].mxu0 %v267
    %v405 = vpop.f32.mrb[0].mxu0
    %v406 = vadd.f32 %v305, %v405
    %v407 = vpop.f32.mrb[0].mxu0
    %v408 = vpop.f32.mrb[0].mxu0
    %v409 = vadd.f32 %v305, %v408
    %v410 = vpop.f32.mrb[0].mxu0
    %411 = vmatprep.mubr.bf16.mxu0 0
    %412 = vmatmul.mubr.bf16.gmra.mrb[0].mxu0 %v270
    %v413 = vpop.f32.mrb[0].mxu0
    %v414 = vadd.f32 %v305, %v413
    %v415 = vpop.f32.mrb[0].mxu0
    %v416 = vpop.f32.mrb[0].mxu0
    %v417 = vadd.f32 %v305, %v416
    %v418 = vpop.f32.mrb[0].mxu0
    %419 = vmatprep.mubr.bf16.mxu0 0
    %420 = vmatmul.mubr.bf16.gmra.mrb[0].mxu0 %v273
    %v421 = vpop.f32.mrb[0].mxu0
    %v422 = vadd.f32 %v305, %v421
    %v423 = vpop.f32.mrb[0].mxu0
    %v424 = vpop.f32.mrb[0].mxu0
    %v425 = vadd.f32 %v305, %v424
    %v426 = vpop.f32.mrb[0].mxu0
    %427 = vmatprep.mubr.bf16.mxu0 0
    %428 = vmatmul.mubr.bf16.gmra.mrb[0].mxu0 %v276
    %v429 = vpop.f32.mrb[0].mxu0
    %v430 = vadd.f32 %v305, %v429
    %v431 = vpop.f32.mrb[0].mxu0
    %v432 = vpop.f32.mrb[0].mxu0
    %v433 = vadd.f32 %v305, %v432
    %v434 = vpop.f32.mrb[0].mxu0
    %435 = vmatprep.mubr.bf16.mxu0 0
    %436 = vmatmul.mubr.bf16.gmra.mrb[0].mxu0 %v279
    %v437 = vpop.f32.mrb[0].mxu0
    %v438 = vadd.f32 %v305, %v437
    %v439 = vpop.f32.mrb[0].mxu0
    %v440 = vpop.f32.mrb[0].mxu0
    %v441 = vadd.f32 %v305, %v440
    %v442 = vpop.f32.mrb[0].mxu0
    %443 = vmatprep.mubr.bf16.mxu0 0
    %444 = vmatmul.mubr.bf16.gmra.mrb[0].mxu0 %v282
    %v445 = vpop.f32.mrb[0].mxu0
    %v446 = vadd.f32 %v305, %v445
    %v447 = vpop.f32.mrb[0].mxu0
    %v448 = vpop.f32.mrb[0].mxu0
    %v449 = vadd.f32 %v305, %v448
    %v450 = vpop.f32.mrb[0].mxu0
    %451 = vdwg.mxu0
    %v452 = vmul.f32 %v390, 0.01
    %v453 = vmul.f32 %v393, 0.01
    %v454 = vmul.f32 %v398, 0.01
    %v455 = vmul.f32 %v401, 0.01
    %v456 = vmul.f32 %v406, 0.01
    %v457 = vmul.f32 %v409, 0.01
    %v458 = vmul.f32 %v414, 0.01
    %v459 = vmul.f32 %v417, 0.01
    %v460 = vmul.f32 %v422, 0.01
    %v461 = vmul.f32 %v425, 0.01
    %v462 = vmul.f32 %v430, 0.01
    %v463 = vmul.f32 %v433, 0.01
    %v464 = vmul.f32 %v438, 0.01
    %v465 = vmul.f32 %v441, 0.01
    %v466 = vmul.f32 %v446, 0.01
    %v467 = vmul.f32 %v449, 0.01
    %v468 = vmax.f32 %v390, %v452
    %v469 = vmax.f32 %v393, %v453
    %v470 = vmax.f32 %v398, %v454
    %v471 = vmax.f32 %v401, %v455
    %v472 = vmax.f32 %v406, %v456
    %v473 = vmax.f32 %v409, %v457
    %v474 = vmax.f32 %v414, %v458
    %v475 = vmax.f32 %v417, %v459
    %v476 = vmax.f32 %v422, %v460
    %v477 = vmax.f32 %v425, %v461
    %v478 = vmax.f32 %v430, %v462
    %v479 = vmax.f32 %v433, %v463
    %v480 = vmax.f32 %v438, %v464
    %v481 = vmax.f32 %v441, %v465
    %v482 = vmax.f32 %v446, %v466
    %v483 = vmax.f32 %v449, %v467
    %v484 = vpack.c.bf16 %v469, %v468
    %v485 = vpack.c.bf16 %v471, %v470
    %v486 = vpack.c.bf16 %v473, %v472
    %v487 = vpack.c.bf16 %v475, %v474
    %v488 = vpack.c.bf16 %v477, %v476
    %v489 = vpack.c.bf16 %v479, %v478
    %v490 = vpack.c.bf16 %v481, %v480
    %v491 = vpack.c.bf16 %v483, %v482
    %v492 = vld [vmem:[%s5] sm:$0xf]
    %v493 = vld [vmem:[%s5 + $0x4] sm:$0xf]
    %v494 = vld [vmem:[%s5 + $0x8] sm:$0xf]
    %v495 = vld [vmem:[%s5 + $0xc] sm:$0xf]
    %v496 = vld [vmem:[%s5 + $0x10] sm:$0xf]
    %v497 = vld [vmem:[%s5 + $0x14] sm:$0xf]
    %v498 = vld [vmem:[%s5 + $0x18] sm:$0xf]
    %v499 = vld [vmem:[%s5 + $0x1c] sm:$0xf]
    %v500 = vld [vmem:[%s5 + $0x20] sm:$0xf]
    %v501 = vld [vmem:[%s5 + $0x24] sm:$0xf]
    %v502 = vld [vmem:[%s5 + $0x28] sm:$0xf]
    %v503 = vld [vmem:[%s5 + $0x2c] sm:$0xf]
    %v504 = vld [vmem:[%s5 + $0x30] sm:$0xf]
    %v505 = vld [vmem:[%s5 + $0x34] sm:$0xf]
    %v506 = vld [vmem:[%s5 + $0x38] sm:$0xf]
    %v507 = vld [vmem:[%s5 + $0x3c] sm:$0xf]
    %v508 = vld [vmem:[%s6] sm:$0x1]
    %v510 = vlaneseq
    %v511 = vshrl.u32 %v510, 7
    %v512 = vsub.s32 0, %v511
    %v513 = vrot.slane %v508, %v512
    %v531 = vunpack.c.l.b16 %v492
    %v532 = vunpack.c.l.b16 %v493
    %v533 = vunpack.c.l.b16 %v494
    %v534 = vunpack.c.l.b16 %v495
    %v535 = vunpack.c.l.b16 %v496
    %v536 = vunpack.c.l.b16 %v497
    %v537 = vunpack.c.l.b16 %v498
    %v538 = vunpack.c.l.b16 %v499
    %v539 = vunpack.c.l.b16 %v500
    %v540 = vunpack.c.l.b16 %v501
    %v541 = vunpack.c.l.b16 %v502
    %v542 = vunpack.c.l.b16 %v503
    %v543 = vunpack.c.l.b16 %v504
    %v544 = vunpack.c.l.b16 %v505
    %v545 = vunpack.c.l.b16 %v506
    %v546 = vunpack.c.l.b16 %v507
    %v547 = vpack.c.b16 %v532, %v531
    %v548 = vpack.c.b16 %v534, %v533
    %v549 = vpack.c.b16 %v536, %v535
    %v550 = vpack.c.b16 %v538, %v537
    %v551 = vpack.c.b16 %v540, %v539
    %v552 = vpack.c.b16 %v542, %v541
    %v553 = vpack.c.b16 %v544, %v543
    %v554 = vpack.c.b16 %v546, %v545
    %563 = vmatprep.subr.bf16.mxu0 0
    %564 = vmatpush1.bf16.msra.mxu0 %v547
    %565 = vmatprep.subr.bf16.mxu0 0
    %566 = vmatpush1.bf16.msra.mxu0 %v548
    %567 = vmatprep.subr.bf16.mxu0 0
    %568 = vmatpush1.bf16.msra.mxu0 %v549
    %569 = vmatprep.subr.bf16.mxu0 0
    %570 = vmatpush1.bf16.msra.mxu0 %v550
    %571 = vmatprep.subr.bf16.mxu0 0
    %572 = vmatpush1.bf16.msra.mxu0 %v551
    %573 = vmatprep.subr.bf16.mxu0 0
    %574 = vmatpush1.bf16.msra.mxu0 %v552
    %575 = vmatprep.subr.bf16.mxu0 0
    %576 = vmatpush1.bf16.msra.mxu0 %v553
    %577 = vmatprep.subr.bf16.mxu0 0
    %578 = vmatpush1.bf16.msra.mxu0 %v554
    %579 = vmatprep.subr.bf16.mxu0 0
    %580 = vmatpush1.bf16.msra.mxu0 0
    %581 = vmatprep.subr.bf16.mxu0 0
    %582 = vmatpush1.bf16.msra.mxu0 0
    %583 = vmatprep.subr.bf16.mxu0 0
    %584 = vmatpush1.bf16.msra.mxu0 0
    %585 = vmatprep.subr.bf16.mxu0 0
    %586 = vmatpush1.bf16.msra.mxu0 0
    %587 = vmatprep.subr.bf16.mxu0 0
    %588 = vmatpush1.bf16.msra.mxu0 0
    %589 = vmatprep.subr.bf16.mxu0 0
    %590 = vmatpush1.bf16.msra.mxu0 0
    %591 = vmatprep.subr.bf16.mxu0 0
    %592 = vmatpush1.bf16.msra.mxu0 0
    %593 = vmatprep.subr.bf16.mxu0 0
    %594 = vmatpush1.bf16.msra.mxu0 0
    %595 = vmatprep.mubr.bf16.mxu0 0
    %596 = vmatmul.mubr.bf16.gmra.mrb[0].mxu0 %v484
    %v597 = vpop.f32.mrb[0].mxu0
    %v598 = vadd.f32 %v513, %v597
    %v599 = vpop.f32.mrb[0].mxu0
    %v600 = vpop.f32.mrb[0].mxu0
    %v601 = vadd.f32 %v513, %v600
    %v602 = vpop.f32.mrb[0].mxu0
    %603 = vmatprep.mubr.bf16.mxu0 0
    %604 = vmatmul.mubr.bf16.gmra.mrb[0].mxu0 %v485
    %v605 = vpop.f32.mrb[0].mxu0
    %v606 = vadd.f32 %v513, %v605
    %v607 = vpop.f32.mrb[0].mxu0
    %v608 = vpop.f32.mrb[0].mxu0
    %v609 = vadd.f32 %v513, %v608
    %v610 = vpop.f32.mrb[0].mxu0
    %611 = vmatprep.mubr.bf16.mxu0 0
    %612 = vmatmul.mubr.bf16.gmra.mrb[0].mxu0 %v486
    %v613 = vpop.f32.mrb[0].mxu0
    %v614 = vadd.f32 %v513, %v613
    %v615 = vpop.f32.mrb[0].mxu0
    %v616 = vpop.f32.mrb[0].mxu0
    %v617 = vadd.f32 %v513, %v616
    %v618 = vpop.f32.mrb[0].mxu0
    %619 = vmatprep.mubr.bf16.mxu0 0
    %620 = vmatmul.mubr.bf16.gmra.mrb[0].mxu0 %v487
    %v621 = vpop.f32.mrb[0].mxu0
    %v622 = vadd.f32 %v513, %v621
    %v623 = vpop.f32.mrb[0].mxu0
    %v624 = vpop.f32.mrb[0].mxu0
    %v625 = vadd.f32 %v513, %v624
    %v626 = vpop.f32.mrb[0].mxu0
    %627 = vmatprep.mubr.bf16.mxu0 0
    %628 = vmatmul.mubr.bf16.gmra.mrb[0].mxu0 %v488
    %v629 = vpop.f32.mrb[0].mxu0
    %v630 = vadd.f32 %v513, %v629
    %v631 = vpop.f32.mrb[0].mxu0
    %v632 = vpop.f32.mrb[0].mxu0
    %v633 = vadd.f32 %v513, %v632
    %v634 = vpop.f32.mrb[0].mxu0
    %635 = vmatprep.mubr.bf16.mxu0 0
    %636 = vmatmul.mubr.bf16.gmra.mrb[0].mxu0 %v489
    %v637 = vpop.f32.mrb[0].mxu0
    %v638 = vadd.f32 %v513, %v637
    %v639 = vpop.f32.mrb[0].mxu0
    %v640 = vpop.f32.mrb[0].mxu0
    %v641 = vadd.f32 %v513, %v640
    %v642 = vpop.f32.mrb[0].mxu0
    %643 = vmatprep.mubr.bf16.mxu0 0
    %644 = vmatmul.mubr.bf16.gmra.mrb[0].mxu0 %v490
    %v645 = vpop.f32.mrb[0].mxu0
    %v646 = vadd.f32 %v513, %v645
    %v647 = vpop.f32.mrb[0].mxu0
    %v648 = vpop.f32.mrb[0].mxu0
    %v649 = vadd.f32 %v513, %v648
    %v650 = vpop.f32.mrb[0].mxu0
    %651 = vmatprep.mubr.bf16.mxu0 0
    %652 = vmatmul.mubr.bf16.gmra.mrb[0].mxu0 %v491
    %v653 = vpop.f32.mrb[0].mxu0
    %v654 = vadd.f32 %v513, %v653
    %v655 = vpop.f32.mrb[0].mxu0
    %v656 = vpop.f32.mrb[0].mxu0
    %v657 = vadd.f32 %v513, %v656
    %v658 = vpop.f32.mrb[0].mxu0
    %659 = vdwg.mxu0
    %v660 = vmul.f32 %v598, 0.01
    %v661 = vmul.f32 %v601, 0.01
    %v662 = vmul.f32 %v606, 0.01
    %v663 = vmul.f32 %v609, 0.01
    %v664 = vmul.f32 %v614, 0.01
    %v665 = vmul.f32 %v617, 0.01
    %v666 = vmul.f32 %v622, 0.01
    %v667 = vmul.f32 %v625, 0.01
    %v668 = vmul.f32 %v630, 0.01
    %v669 = vmul.f32 %v633, 0.01
    %v670 = vmul.f32 %v638, 0.01
    %v671 = vmul.f32 %v641, 0.01
    %v672 = vmul.f32 %v646, 0.01
    %v673 = vmul.f32 %v649, 0.01
    %v674 = vmul.f32 %v654, 0.01
    %v675 = vmul.f32 %v657, 0.01
    %v676 = vmax.f32 %v598, %v660
    %v677 = vmax.f32 %v601, %v661
    %v678 = vmax.f32 %v606, %v662
    %v679 = vmax.f32 %v609, %v663
    %v680 = vmax.f32 %v614, %v664
    %v681 = vmax.f32 %v617, %v665
    %v682 = vmax.f32 %v622, %v666
    %v683 = vmax.f32 %v625, %v667
    %v684 = vmax.f32 %v630, %v668
    %v685 = vmax.f32 %v633, %v669
    %v686 = vmax.f32 %v638, %v670
    %v687 = vmax.f32 %v641, %v671
    %v688 = vmax.f32 %v646, %v672
    %v689 = vmax.f32 %v649, %v673
    %v690 = vmax.f32 %v654, %v674
    %v691 = vmax.f32 %v657, %v675
    %v692 = vpack.c.bf16 %v677, %v676
    %v693 = vpack.c.bf16 %v679, %v678
    %v694 = vpack.c.bf16 %v681, %v680
    %v695 = vpack.c.bf16 %v683, %v682
    %v696 = vpack.c.bf16 %v685, %v684
    %v697 = vpack.c.bf16 %v687, %v686
    %v698 = vpack.c.bf16 %v689, %v688
    %v699 = vpack.c.bf16 %v691, %v690
    %v700 = vld [vmem:[%s7] sm:$0xf]
    %v701 = vld [vmem:[%s7 + $0x4] sm:$0xf]
    %v702 = vld [vmem:[%s7 + $0x8] sm:$0xf]
    %v703 = vld [vmem:[%s7 + $0xc] sm:$0xf]
    %v704 = vld [vmem:[%s7 + $0x10] sm:$0xf]
    %v705 = vld [vmem:[%s7 + $0x14] sm:$0xf]
    %v706 = vld [vmem:[%s7 + $0x18] sm:$0xf]
    %v707 = vld [vmem:[%s7 + $0x1c] sm:$0xf]
    %v708 = vld [vmem:[%s7 + $0x20] sm:$0xf]
    %v709 = vld [vmem:[%s7 + $0x24] sm:$0xf]
    %v710 = vld [vmem:[%s7 + $0x28] sm:$0xf]
    %v711 = vld [vmem:[%s7 + $0x2c] sm:$0xf]
    %v712 = vld [vmem:[%s7 + $0x30] sm:$0xf]
    %v713 = vld [vmem:[%s7 + $0x34] sm:$0xf]
    %v714 = vld [vmem:[%s7 + $0x38] sm:$0xf]
    %v715 = vld [vmem:[%s7 + $0x3c] sm:$0xf]
    %v716 = vld [vmem:[%s8] sm:$0x1]
    %v718 = vlaneseq
    %v719 = vshrl.u32 %v718, 7
    %v720 = vsub.s32 0, %v719
    %v721 = vrot.slane %v716, %v720
    %v739 = vunpack.c.l.b16 %v700
    %v740 = vunpack.c.l.b16 %v701
    %v741 = vunpack.c.l.b16 %v702
    %v742 = vunpack.c.l.b16 %v703
    %v743 = vunpack.c.l.b16 %v704
    %v744 = vunpack.c.l.b16 %v705
    %v745 = vunpack.c.l.b16 %v706
    %v746 = vunpack.c.l.b16 %v707
    %v747 = vunpack.c.l.b16 %v708
    %v748 = vunpack.c.l.b16 %v709
    %v749 = vunpack.c.l.b16 %v710
    %v750 = vunpack.c.l.b16 %v711
    %v751 = vunpack.c.l.b16 %v712
    %v752 = vunpack.c.l.b16 %v713
    %v753 = vunpack.c.l.b16 %v714
    %v754 = vunpack.c.l.b16 %v715
    %v755 = vpack.c.b16 %v740, %v739
    %v756 = vpack.c.b16 %v742, %v741
    %v757 = vpack.c.b16 %v744, %v743
    %v758 = vpack.c.b16 %v746, %v745
    %v759 = vpack.c.b16 %v748, %v747
    %v760 = vpack.c.b16 %v750, %v749
    %v761 = vpack.c.b16 %v752, %v751
    %v762 = vpack.c.b16 %v754, %v753
    %771 = vmatprep.subr.bf16.mxu0 0
    %772 = vmatpush1.bf16.msra.mxu0 %v755
    %773 = vmatprep.subr.bf16.mxu0 0
    %774 = vmatpush1.bf16.msra.mxu0 %v756
    %775 = vmatprep.subr.bf16.mxu0 0
    %776 = vmatpush1.bf16.msra.mxu0 %v757
    %777 = vmatprep.subr.bf16.mxu0 0
    %778 = vmatpush1.bf16.msra.mxu0 %v758
    %779 = vmatprep.subr.bf16.mxu0 0
    %780 = vmatpush1.bf16.msra.mxu0 %v759
    %781 = vmatprep.subr.bf16.mxu0 0
    %782 = vmatpush1.bf16.msra.mxu0 %v760
    %783 = vmatprep.subr.bf16.mxu0 0
    %784 = vmatpush1.bf16.msra.mxu0 %v761
    %785 = vmatprep.subr.bf16.mxu0 0
    %786 = vmatpush1.bf16.msra.mxu0 %v762
    %787 = vmatprep.subr.bf16.mxu0 0
    %788 = vmatpush1.bf16.msra.mxu0 0
    %789 = vmatprep.subr.bf16.mxu0 0
    %790 = vmatpush1.bf16.msra.mxu0 0
    %791 = vmatprep.subr.bf16.mxu0 0
    %792 = vmatpush1.bf16.msra.mxu0 0
    %793 = vmatprep.subr.bf16.mxu0 0
    %794 = vmatpush1.bf16.msra.mxu0 0
    %795 = vmatprep.subr.bf16.mxu0 0
    %796 = vmatpush1.bf16.msra.mxu0 0
    %797 = vmatprep.subr.bf16.mxu0 0
    %798 = vmatpush1.bf16.msra.mxu0 0
    %799 = vmatprep.subr.bf16.mxu0 0
    %800 = vmatpush1.bf16.msra.mxu0 0
    %801 = vmatprep.subr.bf16.mxu0 0
    %802 = vmatpush1.bf16.msra.mxu0 0
    %803 = vmatprep.mubr.bf16.mxu0 0
    %804 = vmatmul.mubr.bf16.gmra.mrb[0].mxu0 %v692
    %v805 = vpop.f32.mrb[0].mxu0
    %v806 = vadd.f32 %v721, %v805
    %v807 = vpop.f32.mrb[0].mxu0
    %v808 = vpop.f32.mrb[0].mxu0
    %v809 = vadd.f32 %v721, %v808
    %v810 = vpop.f32.mrb[0].mxu0
    %811 = vmatprep.mubr.bf16.mxu0 0
    %812 = vmatmul.mubr.bf16.gmra.mrb[0].mxu0 %v693
    %v813 = vpop.f32.mrb[0].mxu0
    %v814 = vadd.f32 %v721, %v813
    %v815 = vpop.f32.mrb[0].mxu0
    %v816 = vpop.f32.mrb[0].mxu0
    %v817 = vadd.f32 %v721, %v816
    %v818 = vpop.f32.mrb[0].mxu0
    %819 = vmatprep.mubr.bf16.mxu0 0
    %820 = vmatmul.mubr.bf16.gmra.mrb[0].mxu0 %v694
    %v821 = vpop.f32.mrb[0].mxu0
    %v822 = vadd.f32 %v721, %v821
    %v823 = vpop.f32.mrb[0].mxu0
    %v824 = vpop.f32.mrb[0].mxu0
    %v825 = vadd.f32 %v721, %v824
    %v826 = vpop.f32.mrb[0].mxu0
    %827 = vmatprep.mubr.bf16.mxu0 0
    %828 = vmatmul.mubr.bf16.gmra.mrb[0].mxu0 %v695
    %v829 = vpop.f32.mrb[0].mxu0
    %v830 = vadd.f32 %v721, %v829
    %v831 = vpop.f32.mrb[0].mxu0
    %v832 = vpop.f32.mrb[0].mxu0
    %v833 = vadd.f32 %v721, %v832
    %v834 = vpop.f32.mrb[0].mxu0
    %835 = vmatprep.mubr.bf16.mxu0 0
    %836 = vmatmul.mubr.bf16.gmra.mrb[0].mxu0 %v696
    %v837 = vpop.f32.mrb[0].mxu0
    %v838 = vadd.f32 %v721, %v837
    %v839 = vpop.f32.mrb[0].mxu0
    %v840 = vpop.f32.mrb[0].mxu0
    %v841 = vadd.f32 %v721, %v840
    %v842 = vpop.f32.mrb[0].mxu0
    %843 = vmatprep.mubr.bf16.mxu0 0
    %844 = vmatmul.mubr.bf16.gmra.mrb[0].mxu0 %v697
    %v845 = vpop.f32.mrb[0].mxu0
    %v846 = vadd.f32 %v721, %v845
    %v847 = vpop.f32.mrb[0].mxu0
    %v848 = vpop.f32.mrb[0].mxu0
    %v849 = vadd.f32 %v721, %v848
    %v850 = vpop.f32.mrb[0].mxu0
    %851 = vmatprep.mubr.bf16.mxu0 0
    %852 = vmatmul.mubr.bf16.gmra.mrb[0].mxu0 %v698
    %v853 = vpop.f32.mrb[0].mxu0
    %v854 = vadd.f32 %v721, %v853
    %v855 = vpop.f32.mrb[0].mxu0
    %v856 = vpop.f32.mrb[0].mxu0
    %v857 = vadd.f32 %v721, %v856
    %v858 = vpop.f32.mrb[0].mxu0
    %859 = vmatprep.mubr.bf16.mxu0 0
    %860 = vmatmul.mubr.bf16.gmra.mrb[0].mxu0 %v699
    %v861 = vpop.f32.mrb[0].mxu0
    %v862 = vadd.f32 %v721, %v861
    %v863 = vpop.f32.mrb[0].mxu0
    %v864 = vpop.f32.mrb[0].mxu0
    %v865 = vadd.f32 %v721, %v864
    %v866 = vpop.f32.mrb[0].mxu0
    %867 = vdwg.mxu0
    %v868 = vmul.f32 %v806, 0.01
    %v869 = vmul.f32 %v809, 0.01
    %v870 = vmul.f32 %v814, 0.01
    %v871 = vmul.f32 %v817, 0.01
    %v872 = vmul.f32 %v822, 0.01
    %v873 = vmul.f32 %v825, 0.01
    %v874 = vmul.f32 %v830, 0.01
    %v875 = vmul.f32 %v833, 0.01
    %v876 = vmul.f32 %v838, 0.01
    %v877 = vmul.f32 %v841, 0.01
    %v878 = vmul.f32 %v846, 0.01
    %v879 = vmul.f32 %v849, 0.01
    %v880 = vmul.f32 %v854, 0.01
    %v881 = vmul.f32 %v857, 0.01
    %v882 = vmul.f32 %v862, 0.01
    %v883 = vmul.f32 %v865, 0.01
    %v884 = vmax.f32 %v806, %v868
    %v885 = vmax.f32 %v809, %v869
    %v886 = vmax.f32 %v814, %v870
    %v887 = vmax.f32 %v817, %v871
    %v888 = vmax.f32 %v822, %v872
    %v889 = vmax.f32 %v825, %v873
    %v890 = vmax.f32 %v830, %v874
    %v891 = vmax.f32 %v833, %v875
    %v892 = vmax.f32 %v838, %v876
    %v893 = vmax.f32 %v841, %v877
    %v894 = vmax.f32 %v846, %v878
    %v895 = vmax.f32 %v849, %v879
    %v896 = vmax.f32 %v854, %v880
    %v897 = vmax.f32 %v857, %v881
    %v898 = vmax.f32 %v862, %v882
    %v899 = vmax.f32 %v865, %v883
    %900 = vst [vmem:[#allocation2] sm:$0xff] %v884
    %901 = vst [vmem:[#allocation2 + $0x8] sm:$0xff] %v885
    %902 = vst [vmem:[#allocation2 + $0x10] sm:$0xff] %v886
    %903 = vst [vmem:[#allocation2 + $0x18] sm:$0xff] %v887
    %904 = vst [vmem:[#allocation2 + $0x20] sm:$0xff] %v888
    %905 = vst [vmem:[#allocation2 + $0x28] sm:$0xff] %v889
    %906 = vst [vmem:[#allocation2 + $0x30] sm:$0xff] %v890
    %907 = vst [vmem:[#allocation2 + $0x38] sm:$0xff] %v891
    %908 = vst [vmem:[#allocation2 + $0x40] sm:$0xff] %v892
    %909 = vst [vmem:[#allocation2 + $0x48] sm:$0xff] %v893
    %910 = vst [vmem:[#allocation2 + $0x50] sm:$0xff] %v894
    %911 = vst [vmem:[#allocation2 + $0x58] sm:$0xff] %v895
    %912 = vst [vmem:[#allocation2 + $0x60] sm:$0xff] %v896
    %913 = vst [vmem:[#allocation2 + $0x68] sm:$0xff] %v897
    %914 = vst [vmem:[#allocation2 + $0x70] sm:$0xff] %v898
    %915 = vst [vmem:[#allocation2 + $0x78] sm:$0xff] %v899
    // Predicated region
    $region38: #{tpu_custom_call.1} parent=1 // pred_check
      _
    $region39: #{tpu_custom_call.1} parent=1 // pred_check_branch
      %917 = sbr.rel (0) target = $region41
    $region40: #{tpu_custom_call.1} parent=1 // pred_region
      %s919 = ssub.s32 2048, 2048
      %920 = vsyncadd [#allocation3], %s919
      %s921 = sshll.u32 [#allocation2], 4
      %s922 = int_to_ptr.vmem [resolvable:$true] %s921
      %927 = dma.vmem_to_hbm [thread:$0]  %s922, 2048, %s9, [#allocation3], 128, 128, 8
    $region41: #{tpu_custom_call.1} parent=1 // pred_fallthru
      _
    // Predicated region
    $region42: #{tpu_custom_call.1} parent=1 // pred_check
      _
    $region43: #{tpu_custom_call.1} parent=1 // pred_check_branch
      %929 = sbr.rel (0) target = $region45
    $region44: #{tpu_custom_call.1} parent=1 // pred_region
      %930 = dma.done [#allocation3], 2048
    $region45: #{tpu_custom_call.1} parent=1 // pred_fallthru
      _
    %931 = vsyncpa [#allocation3], 1

</llo_original>
